<compile_context>
chip_gen: v5e
topology: v5e:2x2
jax: 0.10.0
libtpu: 0.0.40
codegen_flags: <defaults>
</compile_context>

<pallas_src>
import jax
import jax.numpy as jnp
from jax.experimental import pallas as pl
from jax.experimental.pallas import tpu as pltpu


def _locked_dropout_kernel(x_ref, mask_ref, o_ref):
    # (t_block, bh_block) * (1, bh_block): sublane broadcast on the VPU.
    o_ref[...] = x_ref[...] * mask_ref[...]


def _sublane_tile(dtype):
    """Packed sublane tile: 8 rows for 32-bit, 16 for bf16, 32 for 8-bit."""
    bits = jnp.dtype(dtype).itemsize * 8
    return 8 * max(1, 32 // bits)


# Conservative scoped-VMEM budget that holds on every generation's *default*
# (16 MiB on v5e, 32 MiB on v6e/v7x), with slack for internal scratch.
_SCOPED_VMEM_DEFAULT = 16 << 20
_VMEM_SLACK = 2 << 20


def _pick_blocks(T, BH, dtype, target_bytes):
    """Choose (t_block, bh_block) for a (T, BH) elementwise HBM stream."""
    itemsize = jnp.dtype(dtype).itemsize
    sub = _sublane_tile(dtype)

    mask_bytes = BH * itemsize
    per_block_cap = max(
        64 << 10, (_SCOPED_VMEM_DEFAULT - _VMEM_SLACK - 2 * mask_bytes) // 4)
    target = min(int(target_bytes), per_block_cap)

    # Lane (BH) axis: only chunk when even a minimal (sub x BH) block would
    # blow the target and 128-aligned chunks are legal.
    bh_block = BH
    if sub * BH * itemsize > target and BH % 128 == 0:
        lanes = (target // (sub * itemsize)) // 128 * 128
        bh_block = int(min(BH, max(128, lanes)))

    # Time axis: as many sublane-tile-aligned rows as fit the target.
    rows = (target // (bh_block * itemsize)) // sub * sub
    t_block = int(min(T, max(sub, rows)))
    if t_block >= T:
        t_block = T
        if T >= 2 * sub:
            # Split into >= 2 time blocks so a parallel grid can use both
            # v7x TensorCores even when the tensor fits in one block.
            half = pl.cdiv(pl.cdiv(T, 2), sub) * sub
            if half < T:
                t_block = half
    return t_block, bh_block


def locked_dropout(x, key, dropout=0.5, training=True, *,
                   block_bytes=2 << 20, donate_x=False):
    """LockedDropout forward.  x: (T, B, H) = (seq_len, batch, hidden)."""
    if (not training) or dropout == 0.0:
        return x
    if dropout >= 1.0:
        # 1/(1-p) would be inf (0*inf = NaN); every element is dropped.
        return jnp.zeros_like(x)

    T, B, H = x.shape
    BH = B * H
    keep_prob = 1.0 - float(dropout)
    dtype = x.dtype
    itemsize = jnp.dtype(dtype).itemsize

    # Mask in the compute dtype (matches the module's in-dtype divide).
    keep = jax.random.bernoulli(key, keep_prob, (1, BH))
    mask = keep.astype(dtype) * jnp.asarray(1.0 / keep_prob, dtype)

    x2d = x.reshape(T, BH)
    t_block, bh_block = _pick_blocks(T, BH, dtype, block_bytes)

    # Grid: BH chunks outer (mask block only changes bh-programs times),
    # time chunks inner; both axes independent -> fully parallel.
    grid = (pl.cdiv(BH, bh_block), pl.cdiv(T, t_block))

    vmem_need = 4 * t_block * bh_block * itemsize + 2 * BH * itemsize + _VMEM_SLACK
    vmem_limit = None
    if vmem_need > _SCOPED_VMEM_DEFAULT:
        # Bigger-than-default blocks requested: raise the scoped limit but stay
        # <= 48 MiB so v7x's 64 MiB physical VMEM keeps headroom.
        vmem_limit = int(min(48 << 20, max(vmem_need, 24 << 20)))

    out2d = pl.pallas_call(
        _locked_dropout_kernel,
        out_shape=jax.ShapeDtypeStruct((T, BH), dtype),
        grid=grid,
        in_specs=[
            pl.BlockSpec((t_block, bh_block), lambda j, i: (i, j)),
            # Constant over the inner (time) axis -> resident, no re-DMA.
            # TODO(synk): pl.Buffered(1) on this spec would drop the unused
            # second mask buffer (a few KiB); skipped for portability.
            pl.BlockSpec((1, bh_block), lambda j, i: (0, j)),
        ],
        out_specs=pl.BlockSpec((t_block, bh_block), lambda j, i: (i, j)),
        compiler_params=pltpu.CompilerParams(
            dimension_semantics=("parallel", "parallel"),
            vmem_limit_bytes=vmem_limit,
        ),
        input_output_aliases=({0: 0} if donate_x else {}),
    )(x2d, mask)

    return out2d.reshape(T, B, H)


if __name__ == "__main__":
    key = jax.random.PRNGKey(0)
    kx, kmask, kx2, kmask2 = jax.random.split(key, 4)

    dropout = 0.5
    keep_prob = 1.0 - dropout

    # --- small f32 case (module layout: (seq, batch, hidden)) ---------------
    T, B, H = 8, 4, 32
    x = jax.random.normal(kx, (T, B, H), dtype=jnp.float32)

    y = jax.block_until_ready(
        locked_dropout(x, kmask, dropout=dropout, training=True))

    keep = jax.random.bernoulli(kmask, keep_prob, (1, B * H))
    mask_ref = (keep.astype(x.dtype)
                * jnp.asarray(1.0 / keep_prob, x.dtype)).reshape(1, B, H)
    y_ref = x * mask_ref
    assert jnp.allclose(y, y_ref, atol=1e-6, rtol=1e-6), "mismatch vs reference"

    yn, xn = jax.device_get(y), jax.device_get(x)
    dropped = jax.device_get(mask_ref)[0] == 0.0  # (B, H), locked across time
    assert (abs(yn[:, dropped]) == 0.0).all()
    assert abs(yn[:, ~dropped] - xn[:, ~dropped] / keep_prob).max() < 1e-5

    # eval / p=0 passthrough, p=1 all-dropped guard
    assert (jax.device_get(locked_dropout(x, kmask, dropout, training=False)) == xn).all()
    assert (jax.device_get(locked_dropout(x, kmask, 0.0, training=True)) == xn).all()
    assert (jax.device_get(locked_dropout(x, kmask, 1.0, training=True)) == 0.0).all()

    # --- bf16 case: default blocks -> >=2 time programs (v7x split path) ----
    T2, B2, H2 = 64, 4, 256
    x2 = jax.random.normal(kx2, (T2, B2, H2), dtype=jnp.bfloat16)
    keep2 = jax.random.bernoulli(kmask2, keep_prob, (1, B2 * H2))
    mask2 = (keep2.astype(x2.dtype)
             * jnp.asarray(1.0 / keep_prob, x2.dtype)).reshape(1, B2, H2)
    y2_ref = jax.device_get(x2 * mask2)

    y2 = jax.block_until_ready(
        locked_dropout(x2, kmask2, dropout=dropout, training=True))
    assert (jax.device_get(y2) == y2_ref).all()

    # --- same bf16 tensor, tiny block budget -> 2D (BH x T) chunked grid ----
    y3 = jax.block_until_ready(
        locked_dropout(x2, kmask2, dropout=dropout, training=True,
                       block_bytes=16 << 10))
    assert (jax.device_get(y3) == y2_ref).all()

    print("KERNEL_OK")
</pallas_src>

<mosaic_0001>
module attributes {stable_mosaic.version = 11 : i64} {
  func.func @_locked_dropout_kernel(%arg0: i32, %arg1: i32, %arg2: memref<8x128xf32, #tpu.memory_space<vmem>>, %arg3: memref<1x128xf32, #tpu.memory_space<vmem>>, %arg4: memref<8x128xf32, #tpu.memory_space<vmem>>) attributes {dimension_semantics = [#tpu.dimension_semantics<parallel>, #tpu.dimension_semantics<parallel>], iteration_bounds = array<i64: 1, 1>, scalar_prefetch = 0 : i64, scratch_operands = 0 : i64, tpu.core_type = #tpu.core_type<tc>, window_params = [{transform_indices = @transform_0, window_bounds = array<i64: 8, 128>}, {transform_indices = @transform_1, window_bounds = array<i64: 1, 128>}, {transform_indices = @transform_2, window_bounds = array<i64: 8, 128>}]} {
    %c0 = arith.constant 0 : index
    %c0_0 = arith.constant 0 : index
    %0 = vector.load %arg2[%c0, %c0_0] : memref<8x128xf32, #tpu.memory_space<vmem>>, vector<8x128xf32>
    %c0_1 = arith.constant 0 : index
    %c0_2 = arith.constant 0 : index
    %1 = vector.load %arg3[%c0_1, %c0_2] : memref<1x128xf32, #tpu.memory_space<vmem>>, vector<1x128xf32>
    %2 = vector.broadcast %1 : vector<1x128xf32> to vector<8x128xf32>
    %3 = arith.mulf %0, %2 : vector<8x128xf32>
    %c0_3 = arith.constant 0 : index
    %c0_4 = arith.constant 0 : index
    %4 = vector.load %arg4[%c0_3, %c0_4] : memref<8x128xf32, #tpu.memory_space<vmem>>, vector<8x128xf32>
    tpu.vector_store %arg4[%c0_3, %c0_4], %3 {strides = array<i32>} : memref<8x128xf32, #tpu.memory_space<vmem>>, vector<8x128xf32>,
    return
  }
  func.func @transform_0(%arg0: i32, %arg1: i32) -> (i32, i32) {
    %c0_i32 = arith.constant 0 : i32
    return %arg1, %arg0 : i32, i32
  }
  func.func @transform_1(%arg0: i32, %arg1: i32) -> (i32, i32) {
    %c0_i32 = arith.constant 0 : i32
    %c0_i32_0 = arith.constant 0 : i32
    return %c0_i32, %arg0 : i32, i32
  }
  func.func @transform_2(%arg0: i32, %arg1: i32) -> (i32, i32) {
    %c0_i32 = arith.constant 0 : i32
    return %arg1, %arg0 : i32, i32
  }
}

</mosaic_0001>

<llo_original>
// kernel: tpu_custom_call.1
$region0: #{tpu_custom_call.1}
  #allocation0 [shape = 'u32[]', space=smem, size = 0x4, offset = 0x4, fixed_abs, tag = 'smem constant byte address 0x4 - core index']
  #allocation1 [shape = 'u32[72,128]{1,0:T(1,128)}', space=vmem, size = 0x9000, scoped, tag = 'internal scratch']
  %s0 = inlined_call_operand.hbm [shape: f32[8,128], index: 0, kind: input, shape index: {}]
  %s1 = inlined_call_operand.hbm [shape: f32[1,128], index: 1, kind: input, shape index: {}]
  %s2 = inlined_call_operand.hbm [shape: f32[8,128], index: 2, kind: output, shape index: {}]
  %s3 = sld [smem:[#allocation0]]
  $region26: #{tpu_custom_call.1} parent=0
    _
  %s5 = ssub.s32 1, %s3
  %s6 = scalar_select 0, %s5, %s3
  $region1: #{tpu_custom_call.1} parent=0
    #allocation2 [shape = 'u8[4096]{0}', space=vmem, size = 0x1000, scoped, tag = 'input window, operand 0, single buffered']
    #allocation3 [shape = 's32[1]{0}', space=sflag, size = 0x4, scoped, tag = 'scoped memory for tpu_custom_call.1']
    #allocation4 [shape = 's32[1]{0}', space=sflag, size = 0x4, scoped, tag = 'scoped memory for tpu_custom_call.1']
    #allocation5 [shape = 'u8[512]{0}', space=vmem, size = 0x400, scoped, tag = 'input window, operand 1, single buffered']
    #allocation6 [shape = 's32[1]{0}', space=sflag, size = 0x4, scoped, tag = 'scoped memory for tpu_custom_call.1']
    #allocation7 [shape = 'u8[4096]{0}', space=vmem, size = 0x1000, scoped, tag = 'output window, operand 0, single buffered']
    %7 = vsyncpa [#allocation3], 0
    %8 = vsyncpa [#allocation6], 0
    %9 = vsyncpa [#allocation4], 0
    // Predicated region
    $region2: #{tpu_custom_call.1} parent=1 // pred_check
      _
    $region3: #{tpu_custom_call.1} parent=1 // pred_check_branch
      %11 = sbr.rel (0) target = $region5
    $region4: #{tpu_custom_call.1} parent=1 // pred_region
      %13 = vsyncadd [#allocation3], 0
      %s15 = sshll.u32 %s0, 4
      %s16 = int_to_ptr.hbm [resolvable:$true] %s15
      %s17 = sshll.u32 [#allocation2], 4
      %s18 = int_to_ptr.vmem [resolvable:$true] %s17
      %20 = dma.hbm_to_vmem [thread:$0]  %s16, 128, %s18, [#allocation3]
    $region5: #{tpu_custom_call.1} parent=1 // pred_fallthru
      _
    // Predicated region
    $region6: #{tpu_custom_call.1} parent=1 // pred_check
      _
    $region7: #{tpu_custom_call.1} parent=1 // pred_check_branch
      %22 = sbr.rel (0) target = $region9
    $region8: #{tpu_custom_call.1} parent=1 // pred_region
      %24 = vsyncadd [#allocation6], 0
      %s26 = sshll.u32 %s1, 4
      %s27 = int_to_ptr.hbm [resolvable:$true] %s26
      %s28 = sshll.u32 [#allocation5], 4
      %s29 = int_to_ptr.vmem [resolvable:$true] %s28
      %31 = dma.hbm_to_vmem [thread:$0]  %s27, 16, %s29, [#allocation6]
    $region9: #{tpu_custom_call.1} parent=1 // pred_fallthru
      _
    // Predicated region
    $region10: #{tpu_custom_call.1} parent=1 // pred_check
      _
    $region11: #{tpu_custom_call.1} parent=1 // pred_check_branch
      %33 = sbr.rel (0) target = $region13
    $region12: #{tpu_custom_call.1} parent=1 // pred_region
      %35 = dma.done [#allocation3], 128
    $region13: #{tpu_custom_call.1} parent=1 // pred_fallthru
      _
    // Predicated region
    $region14: #{tpu_custom_call.1} parent=1 // pred_check
      _
    $region15: #{tpu_custom_call.1} parent=1 // pred_check_branch
      %37 = sbr.rel (0) target = $region17
    $region16: #{tpu_custom_call.1} parent=1 // pred_region
      %39 = dma.done [#allocation6], 16
    $region17: #{tpu_custom_call.1} parent=1 // pred_fallthru
      _
    %v40 = vld [vmem:[#allocation2] sm:$0xff]
    %v41 = vld [vmem:[#allocation5] sm:$0x1]
    %v43 = vperm.slane %v41, 0
    %v45 = vmul.f32 %v40, %v43
    %46 = vst [vmem:[#allocation7] sm:$0xff] %v45
    // Predicated region
    $region18: #{tpu_custom_call.1} parent=1 // pred_check
      _
    $region19: #{tpu_custom_call.1} parent=1 // pred_check_branch
      %48 = sbr.rel (0) target = $region21
    $region20: #{tpu_custom_call.1} parent=1 // pred_region
      %50 = vsyncadd [#allocation4], 0
      %s52 = sshll.u32 [#allocation7], 4
      %s53 = int_to_ptr.vmem [resolvable:$true] %s52
      %s54 = sshll.u32 %s2, 4
      %s55 = int_to_ptr.hbm [resolvable:$true] %s54
      %57 = dma.vmem_to_hbm [thread:$0]  %s53, 128, %s55, [#allocation4]
    $region21: #{tpu_custom_call.1} parent=1 // pred_fallthru
      _
    // Predicated region
    $region22: #{tpu_custom_call.1} parent=1 // pred_check
      _
    $region23: #{tpu_custom_call.1} parent=1 // pred_check_branch
      %59 = sbr.rel (0) target = $region25
    $region24: #{tpu_custom_call.1} parent=1 // pred_region
      %61 = dma.done [#allocation4], 128
    $region25: #{tpu_custom_call.1} parent=1 // pred_fallthru
      _
    %62 = vsyncpa [#allocation3], 1
    %63 = vsyncpa [#allocation6], 1
    %64 = vsyncpa [#allocation4], 1

</llo_original>
